<compile_context>
chip_gen: v7x
topology: tpu7x:2x2x1
jax: 0.10.0
libtpu: 0.0.40
codegen_flags: <defaults>
</compile_context>

<pallas_src>
import functools
import math

import jax
import jax.numpy as jnp
from jax.experimental import pallas as pl
from jax.experimental.pallas import tpu as pltpu

NUM_ORGAN = 3
EPS = 1e-5
LANES = 128
SUB = 8  # f32 / int32 sublane multiple


def _dice_reduce_kernel(pred_ref, tgt_ref, out_ref, *, tile_rows, total_rows, need_mask):
    # pred_ref: (1, 1, tile_rows, 128) float -- pred channel (organ+1), spatial tile s
    # tgt_ref : (1, tile_rows, 128) int32    -- label tile s (block index is independent
    #            of the organ axis, so it is fetched once per spatial tile)
    # out_ref : (1, NUM_ORGAN, 3, 128) f32   -- resident per-batch lane-wise accumulator
    #            [:, o, 0] intersection, [:, o, 1] sum(pred^2), [:, o, 2] sum(onehot)
    s = pl.program_id(1)   # spatial tile
    o = pl.program_id(2)   # organ index 0..NUM_ORGAN-1 -> label o+1, pred channel o+1

    @pl.when(jnp.logical_and(s == 0, o == 0))
    def _init():
        out_ref[...] = jnp.zeros_like(out_ref)

    p = pred_ref[0, 0].astype(jnp.float32)      # (tile_rows, 128)
    t = tgt_ref[0]                              # (tile_rows, 128) int32
    label = o + 1

    if need_mask:
        # Ragged last row-tile: rows >= total_rows hold undefined data -> mask them.
        row = jax.lax.broadcasted_iota(jnp.int32, (tile_rows, LANES), 0)
        valid = (s * tile_rows + row) < total_rows
        p = jnp.where(valid, p, 0.0)
        hit = jnp.logical_and(valid, t == label)
    else:
        hit = t == label

    onehot = hit.astype(jnp.float32)

    # Per-lane partial sums (sublane reduction -> VALU adds + one tiny in-vreg reduce);
    # the cross-lane reduce is deferred to JAX, once per (batch, organ).
    inter_p = jnp.sum(p * onehot, axis=0, keepdims=True)   # (1, 128)
    psq_p = jnp.sum(p * p, axis=0, keepdims=True)          # (1, 128)
    tsq_p = jnp.sum(onehot, axis=0, keepdims=True)         # (1, 128)
    partial = jnp.concatenate([inter_p, psq_p, tsq_p], axis=0)  # (3, 128)

    # Static dispatch over the (tiny, fixed) organ count keeps all ref indexing static.
    for oi in range(NUM_ORGAN):
        @pl.when(o == oi)
        def _acc(oi=oi):
            out_ref[0, oi] += partial


def dice_loss(pred, target, *, tile_rows=8192):
    """pred: (B, NUM_ORGAN+1, D, H, W) float; target: (B, D, H, W) integer labels."""
    B, C = pred.shape[0], pred.shape[1]
    assert C == NUM_ORGAN + 1, f"expected {NUM_ORGAN + 1} channels, got {C}"
    spatial = pred.shape[2:]
    assert tuple(target.shape) == (B, *spatial)
    N = math.prod(spatial)

    if target.dtype != jnp.int32:
        target = target.astype(jnp.int32)

    # Lane-dense flatten; both reshapes below are free (contiguous trailing dims).
    pred_flat = pred.reshape(B, C, N)
    tgt_flat = target.reshape(B, N)

    rem = (-N) % LANES
    if rem:
        # TODO(synk): zero-copy tail handling (manual DMA from pl.ANY) would avoid this
        # pad copy; the module's nominal (48, 384, 512) volume never takes this path.
        pred_flat = jnp.pad(pred_flat, ((0, 0), (0, 0), (0, rem)))
        tgt_flat = jnp.pad(tgt_flat, ((0, 0), (0, rem)))  # 0 == background
    R = (N + rem) // LANES

    pred_r = pred_flat.reshape(B, C, R, LANES)
    tgt_r = tgt_flat.reshape(B, R, LANES)

    # Tile rows: full array if it fits, else a multiple of 8 sublanes; the ragged
    # remainder (if any) is masked in-kernel instead of padded in HBM.
    if tile_rows >= R:
        tr = R
    else:
        tr = max(SUB, (int(tile_rows) // SUB) * SUB)
    num_tiles = pl.cdiv(R, tr)
    need_mask = (R % tr) != 0

    kernel = functools.partial(
        _dice_reduce_kernel, tile_rows=tr, total_rows=R, need_mask=need_mask
    )

    # Double-buffered pred + target blocks (+ headroom); covers v5e's 16 MiB default
    # scoped VMEM, stays well under v7x's 64 MiB physical VMEM.
    vmem_limit = int(max(32 << 20, min(2 * 2 * tr * LANES * 4 + (2 << 20), 64 << 20)))

    lane_sums = pl.pallas_call(
        kernel,
        out_shape=jax.ShapeDtypeStruct((B, NUM_ORGAN, 3, LANES), jnp.float32),
        grid_spec=pltpu.PrefetchScalarGridSpec(
            num_scalar_prefetch=0,
            grid=(B, num_tiles, NUM_ORGAN),   # organ innermost -> target fetched once/tile
            in_specs=[
                # pred channel organ+1 (background channel 0 never streamed)
                pl.BlockSpec((1, 1, tr, LANES), lambda b, s, o: (b, o + 1, s, 0)),
                # int32 label tile; index independent of o -> copy elided on organ steps
                pl.BlockSpec((1, tr, LANES), lambda b, s, o: (b, s, 0)),
            ],
            # Output block index depends only on b -> resident accumulator across (s, o).
            out_specs=pl.BlockSpec(
                (1, NUM_ORGAN, 3, LANES), lambda b, s, o: (b, 0, 0, 0)
            ),
        ),
        compiler_params=pltpu.CompilerParams(
            dimension_semantics=("parallel", "arbitrary", "arbitrary"),
            vmem_limit_bytes=vmem_limit,
        ),
    )(pred_r, tgt_r)

    sums = jnp.sum(lane_sums, axis=-1)         # (B, NUM_ORGAN, 3): tiny cross-lane reduce
    inter = sums[..., 0]
    psq = sums[..., 1]
    tsq = sums[..., 2]
    dice = jnp.sum(2.0 * inter / (psq + tsq + EPS), axis=1) / NUM_ORGAN   # (B,)
    return jnp.mean(1.0 - dice)                                            # scalar


def dice_loss_ref(pred, target):
    """Pure-JAX reference mirroring the PyTorch module."""
    dice = 0.0
    for organ_index in range(1, NUM_ORGAN + 1):
        onehot = (target == organ_index).astype(jnp.float32)
        p = pred[:, organ_index].astype(jnp.float32)
        inter = jnp.sum(p * onehot, axis=(1, 2, 3))
        psq = jnp.sum(p * p, axis=(1, 2, 3))
        tsq = jnp.sum(onehot * onehot, axis=(1, 2, 3))
        dice = dice + 2.0 * inter / (psq + tsq + EPS)
    dice = dice / NUM_ORGAN
    return jnp.mean(1.0 - dice)


if __name__ == "__main__":
    # Small shapes consistent with the module: (B, 4, D, H, W) pred, (B, D, H, W) labels.
    # N = 4*24*80 = 7680 = 60*128 -> no lane padding, exercising the zero-copy path.
    B, C, D, H, W = 2, NUM_ORGAN + 1, 4, 24, 80
    key = jax.random.PRNGKey(0)
    kp, kt = jax.random.split(key)
    pred = jax.nn.softmax(
        jax.random.normal(kp, (B, C, D, H, W), dtype=jnp.float32), axis=1
    )
    target = jax.random.randint(kt, (B, D, H, W), 0, NUM_ORGAN + 1, dtype=jnp.int32)

    loss_ref = jax.block_until_ready(dice_loss_ref(pred, target))

    # Default tile size (single spatial tile at this toy size).
    loss1 = jax.block_until_ready(dice_loss(pred, target))
    # Small tile size: multi-tile accumulation + ragged last tile masking (60 = 3*16 + 12).
    loss2 = jax.block_until_ready(dice_loss(pred, target, tile_rows=16))

    assert jnp.allclose(loss1, loss_ref, rtol=1e-5, atol=1e-5), (loss1, loss_ref)
    assert jnp.allclose(loss2, loss_ref, rtol=1e-5, atol=1e-5), (loss2, loss_ref)

    # N not a multiple of 128 exercises the (rare) lane-pad fallback path.
    D2, H2, W2 = 3, 6, 7  # N = 126
    pred2 = jax.nn.softmax(
        jax.random.normal(kp, (B, C, D2, H2, W2), dtype=jnp.float32), axis=1
    )
    target2 = jax.random.randint(kt, (B, D2, H2, W2), 0, NUM_ORGAN + 1, dtype=jnp.int32)
    loss_ref2 = jax.block_until_ready(dice_loss_ref(pred2, target2))
    loss3 = jax.block_until_ready(dice_loss(pred2, target2))
    assert jnp.allclose(loss3, loss_ref2, rtol=1e-5, atol=1e-5), (loss3, loss_ref2)

    print("KERNEL_OK")
</pallas_src>

<mosaic_0001>
module attributes {stable_mosaic.version = 11 : i64} {
  func.func @_dice_reduce_kernel(%arg0: i32, %arg1: i32, %arg2: i32, %arg3: memref<1x1x60x128xf32, #tpu.memory_space<vmem>>, %arg4: memref<1x60x128xi32, #tpu.memory_space<vmem>>, %arg5: memref<1x3x3x128xf32, #tpu.memory_space<vmem>>) attributes {dimension_semantics = [#tpu.dimension_semantics<parallel>, #tpu.dimension_semantics<arbitrary>, #tpu.dimension_semantics<arbitrary>], iteration_bounds = array<i64: 2, 1, 3>, scalar_prefetch = 0 : i64, scratch_operands = 0 : i64, tpu.core_type = #tpu.core_type<tc>, window_params = [{transform_indices = @transform_0, window_bounds = array<i64: 1, 1, 60, 128>}, {transform_indices = @transform_1, window_bounds = array<i64: 1, 60, 128>}, {transform_indices = @transform_2, window_bounds = array<i64: 1, 3, 3, 128>}]} {
    %c0_i32 = arith.constant 0 : i32
    %0 = arith.cmpi eq, %arg1, %c0_i32 : i32
    %c0_i32_0 = arith.constant 0 : i32
    %1 = arith.cmpi eq, %arg2, %c0_i32_0 : i32
    %2 = arith.andi %0, %1 : i1
    %3 = arith.extui %2 : i1 to i32
    %c0_i32_1 = arith.constant 0 : i32
    %4 = arith.cmpi ne, %3, %c0_i32_1 : i32
    scf.if %4 {
      %cst_15 = arith.constant 0.000000e+00 : f32
      %32 = vector.broadcast %cst_15 : f32 to vector<1x3x3x128xf32>
      %c0_16 = arith.constant 0 : index
      %c0_17 = arith.constant 0 : index
      %c0_18 = arith.constant 0 : index
      %c0_19 = arith.constant 0 : index
      %33 = vector.load %arg5[%c0_16, %c0_17, %c0_18, %c0_19] : memref<1x3x3x128xf32, #tpu.memory_space<vmem>>, vector<1x3x3x128xf32>
      tpu.vector_store %arg5[%c0_16, %c0_17, %c0_18, %c0_19], %32 {strides = array<i32>} : memref<1x3x3x128xf32, #tpu.memory_space<vmem>>, vector<1x3x3x128xf32>,
    } else {
    }
    %c0 = arith.constant 0 : index
    %c0_2 = arith.constant 0 : index
    %c0_3 = arith.constant 0 : index
    %c0_4 = arith.constant 0 : index
    %5 = vector.load %arg3[%c0, %c0_2, %c0_3, %c0_4] : memref<1x1x60x128xf32, #tpu.memory_space<vmem>>, vector<1x1x60x128xf32>
    %6 = vector.shape_cast %5 : vector<1x1x60x128xf32> to vector<60x128xf32>
    %c0_5 = arith.constant 0 : index
    %c0_6 = arith.constant 0 : index
    %c0_7 = arith.constant 0 : index
    %7 = vector.load %arg4[%c0_5, %c0_6, %c0_7] : memref<1x60x128xi32, #tpu.memory_space<vmem>>, vector<1x60x128xi32>
    %8 = vector.shape_cast %7 : vector<1x60x128xi32> to vector<60x128xi32>
    %c1_i32 = arith.constant 1 : i32
    %9 = arith.addi %arg2, %c1_i32 : i32
    %10 = vector.broadcast %9 : i32 to vector<60x128xi32>
    %11 = arith.cmpi eq, %8, %10 : vector<60x128xi32>
    %12 = arith.extui %11 : vector<60x128xi1> to vector<60x128xi32>
    %13 = arith.sitofp %12 : vector<60x128xi32> to vector<60x128xf32>
    %14 = arith.mulf %6, %13 : vector<60x128xf32>
    %cst = arith.constant dense<0.000000e+00> : vector<128xf32>
    %15 = vector.multi_reduction <add>, %14, %cst [0] : vector<60x128xf32> to vector<128xf32>
    %16 = vector.shape_cast %15 : vector<128xf32> to vector<1x128xf32>
    %17 = arith.mulf %6, %6 : vector<60x128xf32>
    %cst_8 = arith.constant dense<0.000000e+00> : vector<128xf32>
    %18 = vector.multi_reduction <add>, %17, %cst_8 [0] : vector<60x128xf32> to vector<128xf32>
    %19 = vector.shape_cast %18 : vector<128xf32> to vector<1x128xf32>
    %cst_9 = arith.constant dense<0.000000e+00> : vector<128xf32>
    %20 = vector.multi_reduction <add>, %13, %cst_9 [0] : vector<60x128xf32> to vector<128xf32>
    %21 = vector.shape_cast %20 : vector<128xf32> to vector<1x128xf32>
    %22 = tpu.concatenate %16, %19, %21 in 0 : vector<1x128xf32>, vector<1x128xf32>, vector<1x128xf32> -> vector<3x128xf32>
    %c0_i32_10 = arith.constant 0 : i32
    %23 = arith.cmpi eq, %arg2, %c0_i32_10 : i32
    %24 = arith.extui %23 : i1 to i32
    %c0_i32_11 = arith.constant 0 : i32
    %25 = arith.cmpi ne, %24, %c0_i32_11 : i32
    scf.if %25 {
      %c0_15 = arith.constant 0 : index
      %c0_16 = arith.constant 0 : index
      %c0_17 = arith.constant 0 : index
      %c0_18 = arith.constant 0 : index
      %32 = vector.load %arg5[%c0_15, %c0_16, %c0_17, %c0_18] : memref<1x3x3x128xf32, #tpu.memory_space<vmem>>, vector<1x1x3x128xf32>
      %33 = vector.shape_cast %32 : vector<1x1x3x128xf32> to vector<3x128xf32>
      %34 = arith.addf %33, %22 : vector<3x128xf32>
      %c0_19 = arith.constant 0 : index
      %c0_20 = arith.constant 0 : index
      %c0_21 = arith.constant 0 : index
      %c0_22 = arith.constant 0 : index
      %35 = vector.load %arg5[%c0_19, %c0_20, %c0_21, %c0_22] : memref<1x3x3x128xf32, #tpu.memory_space<vmem>>, vector<1x1x3x128xf32>
      %36 = vector.shape_cast %35 : vector<1x1x3x128xf32> to vector<3x128xf32>
      %37 = vector.shape_cast %34 : vector<3x128xf32> to vector<1x1x3x128xf32>
      tpu.vector_store %arg5[%c0_19, %c0_20, %c0_21, %c0_22], %37 {strides = array<i32>} : memref<1x3x3x128xf32, #tpu.memory_space<vmem>>, vector<1x1x3x128xf32>,
    } else {
    }
    %c1_i32_12 = arith.constant 1 : i32
    %26 = arith.cmpi eq, %arg2, %c1_i32_12 : i32
    %27 = arith.extui %26 : i1 to i32
    %c0_i32_13 = arith.constant 0 : i32
    %28 = arith.cmpi ne, %27, %c0_i32_13 : i32
    scf.if %28 {
      %c0_15 = arith.constant 0 : index
      %c1 = arith.constant 1 : index
      %c0_16 = arith.constant 0 : index
      %c0_17 = arith.constant 0 : index
      %32 = vector.load %arg5[%c0_15, %c1, %c0_16, %c0_17] : memref<1x3x3x128xf32, #tpu.memory_space<vmem>>, vector<1x1x3x128xf32>
      %33 = vector.shape_cast %32 : vector<1x1x3x128xf32> to vector<3x128xf32>
      %34 = arith.addf %33, %22 : vector<3x128xf32>
      %c0_18 = arith.constant 0 : index
      %c1_19 = arith.constant 1 : index
      %c0_20 = arith.constant 0 : index
      %c0_21 = arith.constant 0 : index
      %35 = vector.load %arg5[%c0_18, %c1_19, %c0_20, %c0_21] : memref<1x3x3x128xf32, #tpu.memory_space<vmem>>, vector<1x1x3x128xf32>
      %36 = vector.shape_cast %35 : vector<1x1x3x128xf32> to vector<3x128xf32>
      %37 = vector.shape_cast %34 : vector<3x128xf32> to vector<1x1x3x128xf32>
      tpu.vector_store %arg5[%c0_18, %c1_19, %c0_20, %c0_21], %37 {strides = array<i32>} : memref<1x3x3x128xf32, #tpu.memory_space<vmem>>, vector<1x1x3x128xf32>,
    } else {
    }
    %c2_i32 = arith.constant 2 : i32
    %29 = arith.cmpi eq, %arg2, %c2_i32 : i32
    %30 = arith.extui %29 : i1 to i32
    %c0_i32_14 = arith.constant 0 : i32
    %31 = arith.cmpi ne, %30, %c0_i32_14 : i32
    scf.if %31 {
      %c0_15 = arith.constant 0 : index
      %c2 = arith.constant 2 : index
      %c0_16 = arith.constant 0 : index
      %c0_17 = arith.constant 0 : index
      %32 = vector.load %arg5[%c0_15, %c2, %c0_16, %c0_17] : memref<1x3x3x128xf32, #tpu.memory_space<vmem>>, vector<1x1x3x128xf32>
      %33 = vector.shape_cast %32 : vector<1x1x3x128xf32> to vector<3x128xf32>
      %34 = arith.addf %33, %22 : vector<3x128xf32>
      %c0_18 = arith.constant 0 : index
      %c2_19 = arith.constant 2 : index
      %c0_20 = arith.constant 0 : index
      %c0_21 = arith.constant 0 : index
      %35 = vector.load %arg5[%c0_18, %c2_19, %c0_20, %c0_21] : memref<1x3x3x128xf32, #tpu.memory_space<vmem>>, vector<1x1x3x128xf32>
      %36 = vector.shape_cast %35 : vector<1x1x3x128xf32> to vector<3x128xf32>
      %37 = vector.shape_cast %34 : vector<3x128xf32> to vector<1x1x3x128xf32>
      tpu.vector_store %arg5[%c0_18, %c2_19, %c0_20, %c0_21], %37 {strides = array<i32>} : memref<1x3x3x128xf32, #tpu.memory_space<vmem>>, vector<1x1x3x128xf32>,
    } else {
    }
    return
  }
  func.func @transform_0(%arg0: i32, %arg1: i32, %arg2: i32) -> (i32, i32, i32, i32) {
    %c1_i32 = arith.constant 1 : i32
    %0 = arith.addi %arg2, %c1_i32 : i32
    %c0_i32 = arith.constant 0 : i32
    %c0_i32_0 = arith.constant 0 : i32
    return %arg0, %0, %arg1, %c0_i32 : i32, i32, i32, i32
  }
  func.func @transform_1(%arg0: i32, %arg1: i32, %arg2: i32) -> (i32, i32, i32) {
    %c0_i32 = arith.constant 0 : i32
    %c0_i32_0 = arith.constant 0 : i32
    return %arg0, %arg1, %c0_i32 : i32, i32, i32
  }
  func.func @transform_2(%arg0: i32, %arg1: i32, %arg2: i32) -> (i32, i32, i32, i32) {
    %c0_i32 = arith.constant 0 : i32
    %c0_i32_0 = arith.constant 0 : i32
    %c0_i32_1 = arith.constant 0 : i32
    %c0_i32_2 = arith.constant 0 : i32
    return %arg0, %c0_i32, %c0_i32_0, %c0_i32_1 : i32, i32, i32, i32
  }
}

</mosaic_0001>

<llo_original>
// kernel: tpu_custom_call.1
$region0: #{tpu_custom_call.1}
  #allocation0 [shape = 'u32[]', space=smem, size = 0x4, offset = 0x4, fixed_abs, tag = 'smem constant byte address 0x4 - core index']
  #allocation1 [shape = 'u32[144,128]{1,0:T(1,128)}', space=vmem, size = 0x12000, scoped, tag = 'internal scratch']
  %s0 = inlined_call_operand.vmem [shape: f32[2,4,60,128], index: 0, kind: input, shape index: {}]
  %s1 = inlined_call_operand.vmem [shape: s32[2,60,128], index: 1, kind: input, shape index: {}]
  %s2 = inlined_call_operand.vmem [shape: f32[2,3,3,128], index: 2, kind: output, shape index: {}]
  %s3 = sld [smem:[#allocation0]]
  $region57: #{tpu_custom_call.1} parent=0
    _
  %s5 = ssub.s32 1, %s3
  %s6 = scalar_select 0, %s5, %s3
  loop: start=0, step=1, limit=8
  $region2: #{tpu_custom_call.1} parent=0 // loop_pre_header
    _
  $region3: #{tpu_custom_call.1} parent=0 // loop_header
    %s8 = sphi 0, %s12
    %p9 = scmp.ge.s32.totalorder %s8, 8
    %s15 = sphi 0, %s34
    %s16 = sphi 0, %s30
    %s17 = sphi 0, %s26
    %s18 = sphi 0, %s15
    %s19 = sphi 0, %s16
    %s20 = sphi 0, %s17
    %s21 = sphi 0, %s18
    %s22 = sphi 0, %s19
    %s23 = sphi 0, %s20
    %s43 = sphi 0, %s45
    %s46 = sphi 0, %s43
    %s47 = sphi 0, %s46
    %s63 = sphi 0, %s47
    %s71 = sphi 0, %s73
    %s74 = sphi 0, %s71
    %s75 = sphi 0, %s74
    %s91 = sphi 0, %s75
    %s97 = sphi 0, %s99
    %s100 = sphi 0, %s97
    %s101 = sphi 0, %s100
    %s117 = sphi 0, %s101
  $region4: #{tpu_custom_call.1} parent=0 // loop_header_branch
    %11 = sbr.rel (%p9) target = $region8
  $region5: #{tpu_custom_call.1} parent=0 // loop_body
    %s13 = ssub.s32 %s8, 1
    %s14 = ssub.s32 %s8, 2
    %s24 = sadd.s32 1, %s17
    %p25 = scmp.ge.s32.totalorder %s24, 3
    %s26 = scalar_select %p25, 0, %s24
    %s27 = sadd.s32 1, %s16
    %s28 = scalar_select %p25, %s27, %s16
    %p29 = scmp.ge.s32.totalorder %s28, 1
    %s30 = scalar_select %p29, 0, %s28
    %s31 = sadd.s32 1, %s15
    %s32 = scalar_select %p29, %s31, %s15
    %p33 = scmp.ge.s32.totalorder %s32, 2
    %s34 = scalar_select %p33, 0, %s32
    %s35 = sadd.s32 %s17, 1
    %s36 = sadd.s32 %s26, 1
    %s37 = ssub.s32 %s15, %s34
    %s38 = ssub.s32 %s35, %s36
    %s39 = sor.u32 %s37, %s38
    %s40 = ssub.s32 %s16, %s30
    %s41 = sor.u32 %s39, %s40
    %p42 = scmp.eq.s32.totalorder %s41, 0
    %s44 = sadd.s32 %s43, 1
    %s45 = scalar_select %p42, %s43, %s44
    %p48 = pneg %p42
    %p49 = scmp.eq.s32.totalorder %s8, 5
    %p50 = por %p48, %p49
    %p51 = scmp.ne.s32.totalorder %s43, %s46
    %p52 = scmp.eq.s32.totalorder %s8, 0
    %p53 = por %p51, %p52
    %p54 = scmp.ne.s32.totalorder %s43, %s46
    %p55 = scmp.eq.s32.totalorder %s13, 5
    %p56 = por %p54, %p55
    %p57 = scmp.ne.s32.totalorder %s46, %s47
    %p58 = scmp.eq.s32.totalorder %s13, 0
    %p59 = por %p57, %p58
    %p60 = scmp.ne.s32.totalorder %s46, %s47
    %p61 = scmp.eq.s32.totalorder %s14, 5
    %p62 = por %p60, %p61
    %p64 = scmp.ne.s32.totalorder %s47, %s63
    %p65 = scmp.eq.s32.totalorder %s14, 0
    %p66 = por %p64, %p65
    %s67 = ssub.s32 %s15, %s34
    %s68 = ssub.s32 %s16, %s30
    %s69 = sor.u32 %s67, %s68
    %p70 = scmp.eq.s32.totalorder %s69, 0
    %s72 = sadd.s32 %s71, 1
    %s73 = scalar_select %p70, %s71, %s72
    %p76 = pneg %p70
    %p77 = scmp.eq.s32.totalorder %s8, 5
    %p78 = por %p76, %p77
    %p79 = scmp.ne.s32.totalorder %s71, %s74
    %p80 = scmp.eq.s32.totalorder %s8, 0
    %p81 = por %p79, %p80
    %p82 = scmp.ne.s32.totalorder %s71, %s74
    %p83 = scmp.eq.s32.totalorder %s13, 5
    %p84 = por %p82, %p83
    %p85 = scmp.ne.s32.totalorder %s74, %s75
    %p86 = scmp.eq.s32.totalorder %s13, 0
    %p87 = por %p85, %p86
    %p88 = scmp.ne.s32.totalorder %s74, %s75
    %p89 = scmp.eq.s32.totalorder %s14, 5
    %p90 = por %p88, %p89
    %p92 = scmp.ne.s32.totalorder %s75, %s91
    %p93 = scmp.eq.s32.totalorder %s14, 0
    %p94 = por %p92, %p93
    %s95 = ssub.s32 %s15, %s34
    %p96 = scmp.eq.s32.totalorder %s95, 0
    %s98 = sadd.s32 %s97, 1
    %s99 = scalar_select %p96, %s97, %s98
    %p102 = pneg %p96
    %p103 = scmp.eq.s32.totalorder %s8, 5
    %p104 = por %p102, %p103
    %p105 = scmp.ne.s32.totalorder %s97, %s100
    %p106 = scmp.eq.s32.totalorder %s8, 0
    %p107 = por %p105, %p106
    %p108 = scmp.ne.s32.totalorder %s97, %s100
    %p109 = scmp.eq.s32.totalorder %s13, 5
    %p110 = por %p108, %p109
    %p111 = scmp.ne.s32.totalorder %s100, %s101
    %p112 = scmp.eq.s32.totalorder %s13, 0
    %p113 = por %p111, %p112
    %p114 = scmp.ne.s32.totalorder %s100, %s101
    %p115 = scmp.eq.s32.totalorder %s14, 5
    %p116 = por %p114, %p115
    %p118 = scmp.ne.s32.totalorder %s101, %s117
    %p119 = scmp.eq.s32.totalorder %s14, 0
    %p120 = por %p118, %p119
    %p121 = scmp.le.s32.totalorder 1, %s8
    %p122 = scmp.lt.s32.totalorder %s8, 7
    %p123 = pnand %p121, %p122
    %p124 = pneg %p123
    // Predicated region
    $region9: #{tpu_custom_call.1} parent=5 // pred_check
      _
    $region10: #{tpu_custom_call.1} parent=5 // pred_check_branch
      %126 = sbr.rel (%p123) target = $region12
    $region11: #{tpu_custom_call.1} parent=5 // pred_region
      %s127 = ssub.s32 %s8, 1
    $region12: #{tpu_custom_call.1} parent=5 // pred_fallthru
      _
    %p128 = scmp.lt.s32.totalorder %s8, 6
    // Predicated region
    $region13: #{tpu_custom_call.1} parent=5 // pred_check
      %p129 = pneg %p128
    $region14: #{tpu_custom_call.1} parent=5 // pred_check_branch
      %131 = sbr.rel (%p129) target = $region16
    $region15: #{tpu_custom_call.1} parent=5 // pred_region
      // Predicated region
      $region17: #{tpu_custom_call.1} parent=15 // pred_check
        %p132 = pneg %p53
      $region18: #{tpu_custom_call.1} parent=15 // pred_check_branch
        %134 = sbr.rel (%p132) target = $region20
      $region19: #{tpu_custom_call.1} parent=15 // pred_region
        %s135 = sadd.s32 %s17, 1
        %s136 = smul.u32 8, %s16
        %p137 = scmp.lt.s32.totalorder %s15, 1
        %s138 = scalar_select %p137, %s15, 1
        %p139 = scmp.lt.s32.totalorder %s135, 3
        %s140 = scalar_select %p139, %s135, 3
        %p141 = scmp.lt.s32.totalorder %s136, 7
        %s142 = scalar_select %p141, %s136, 7
        %s143 = smul.addr %s140, 8
        %s144 = sadd.s32 %s142, %s143
        %s145 = smul.addr %s138, 32
        %s146 = sadd.s32 %s144, %s145
        %s147 = smul.addr %s146, 8
        %s148 = scalar_lea.vmem %s0, %s147
        %s149 = sadd.s32 %s17, 1
        %s150 = smul.u32 8, %s16
      $region20: #{tpu_custom_call.1} parent=15 // pred_fallthru
        _
      // Predicated region
      $region21: #{tpu_custom_call.1} parent=15 // pred_check
        %p151 = pneg %p81
      $region22: #{tpu_custom_call.1} parent=15 // pred_check_branch
        %153 = sbr.rel (%p151) target = $region24
      $region23: #{tpu_custom_call.1} parent=15 // pred_region
        %s154 = smul.u32 8, %s16
        %p155 = scmp.lt.s32.totalorder %s15, 1
        %s156 = scalar_select %p155, %s15, 1
        %p157 = scmp.lt.s32.totalorder %s154, 7
        %s158 = scalar_select %p157, %s154, 7
        %s159 = smul.addr %s156, 8
        %s160 = sadd.s32 %s158, %s159
        %s161 = smul.addr %s160, 8
        %s162 = scalar_lea.vmem %s1, %s161
        %s163 = smul.u32 8, %s16
      $region24: #{tpu_custom_call.1} parent=15 // pred_fallthru
        _
    $region16: #{tpu_custom_call.1} parent=5 // pred_fallthru
      _
    %p164 = scmp.le.s32.totalorder 1, %s8
    %p165 = scmp.lt.s32.totalorder %s8, 7
    %p166 = pnand %p164, %p165
    %p167 = pneg %p166
    // Predicated region
    $region25: #{tpu_custom_call.1} parent=5 // pred_check
      _
    $region26: #{tpu_custom_call.1} parent=5 // pred_check_branch
      %169 = sbr.rel (%p166) target = $region28
    $region27: #{tpu_custom_call.1} parent=5 // pred_region
      %s170 = ssub.s32 %s8, 1
      %s171 = sadd.s32 %s20, 1
      %s172 = smul.u32 8, %s19
      %p173 = scmp.lt.s32.totalorder %s18, 1
      %s174 = scalar_select %p173, %s18, 1
      %p175 = scmp.lt.s32.totalorder %s171, 3
      %s176 = scalar_select %p175, %s171, 3
      %p177 = scmp.lt.s32.totalorder %s172, 7
      %s178 = scalar_select %p177, %s172, 7
      %s179 = smul.addr %s176, 8
      %s180 = sadd.s32 %s178, %s179
      %s181 = smul.addr %s174, 32
      %s182 = sadd.s32 %s180, %s181
      %s183 = smul.addr %s182, 8
      %s184 = scalar_lea.vmem %s0, %s183
      %p185 = pneg %p59
      %p186 = pneg %p56
      %s187 = smul.u32 8, %s19
      %p188 = scmp.lt.s32.totalorder %s18, 1
      %s189 = scalar_select %p188, %s18, 1
      %p190 = scmp.lt.s32.totalorder %s187, 7
      %s191 = scalar_select %p190, %s187, 7
      %s192 = smul.addr %s189, 8
      %s193 = sadd.s32 %s191, %s192
      %s194 = smul.addr %s193, 8
      %s195 = scalar_lea.vmem %s1, %s194
      %p196 = pneg %p87
      %p197 = pneg %p84
      %p198 = pneg %p113
      %p199 = pneg %p110
      %p200 = scmp.lt.s32.totalorder %s18, 1
      %s201 = scalar_select %p200, %s18, 1
      %s202 = smul.addr %s201, 3
      %s203 = smul.addr %s202, 4
      %s204 = scalar_lea.vmem %s2, %s203
      %s205 = sadd.s32 %s20, 1
      %s206 = smul.u32 8, %s19
      %p207 = scmp.lt.s32.totalorder %s18, 1
      %s208 = scalar_select %p207, %s18, 1
      %p209 = scmp.lt.s32.totalorder %s205, 3
      %s210 = scalar_select %p209, %s205, 3
      %p211 = scmp.lt.s32.totalorder %s206, 7
      %s212 = scalar_select %p211, %s206, 7
      %s213 = smul.addr %s210, 8
      %s214 = sadd.s32 %s212, %s213
      %s215 = smul.addr %s208, 32
      %s216 = sadd.s32 %s214, %s215
      %s217 = smul.addr %s216, 8
      %s218 = scalar_lea.vmem %s0, %s217
      %s219 = sadd.s32 %s20, 1
      %s220 = smul.u32 8, %s19
      %s221 = smul.u32 8, %s19
      %p222 = scmp.lt.s32.totalorder %s18, 1
      %s223 = scalar_select %p222, %s18, 1
      %p224 = scmp.lt.s32.totalorder %s221, 7
      %s225 = scalar_select %p224, %s221, 7
      %s226 = smul.addr %s223, 8
      %s227 = sadd.s32 %s225, %s226
      %s228 = smul.addr %s227, 8
      %s229 = scalar_lea.vmem %s1, %s228
      %s230 = smul.u32 8, %s19
      %p231 = scmp.lt.s32.totalorder %s18, 1
      %s232 = scalar_select %p231, %s18, 1
      %s233 = smul.addr %s232, 3
      %s234 = smul.addr %s233, 4
      %s235 = scalar_lea.vmem %s2, %s234
      %p236 = scmp.eq.s32.totalorder %s19, 0
      %p237 = scmp.eq.s32.totalorder %s20, 0
      %p238 = pnand %p236, %p237
      %p239 = pneg %p238
      // Predicated region
      $region29: #{tpu_custom_call.1} parent=27 // pred_check
        _
      $region30: #{tpu_custom_call.1} parent=27 // pred_check_branch
        %241 = sbr.rel (%p238) target = $region32
      $region31: #{tpu_custom_call.1} parent=27 // pred_region
        %242 = vst [vmem:[%s235] sm:$0x7] 0.0
        %243 = vst [vmem:[%s235 + $0x4] sm:$0x7] 0.0
        %244 = vst [vmem:[%s235 + $0x8] sm:$0x7] 0.0
      $region32: #{tpu_custom_call.1} parent=27 // pred_fallthru
        _
      %v245 = vld [vmem:[%s218] sm:$0xff]
      %v246 = vld [vmem:[%s218 + $0x8] sm:$0xff]
      %v247 = vld [vmem:[%s218 + $0x10] sm:$0xff]
      %v248 = vld [vmem:[%s218 + $0x18] sm:$0xff]
      %v249 = vld [vmem:[%s218 + $0x20] sm:$0xff]
      %v250 = vld [vmem:[%s218 + $0x28] sm:$0xff]
      %v251 = vld [vmem:[%s218 + $0x30] sm:$0xff]
      %v252 = vld [vmem:[%s218 + $0x38] sm:$0xf]
      %v253 = vld [vmem:[%s229] sm:$0xff]
      %v254 = vld [vmem:[%s229 + $0x8] sm:$0xff]
      %v255 = vld [vmem:[%s229 + $0x10] sm:$0xff]
      %v256 = vld [vmem:[%s229 + $0x18] sm:$0xff]
      %v257 = vld [vmem:[%s229 + $0x20] sm:$0xff]
      %v258 = vld [vmem:[%s229 + $0x28] sm:$0xff]
      %v259 = vld [vmem:[%s229 + $0x30] sm:$0xff]
      %v260 = vld [vmem:[%s229 + $0x38] sm:$0xf]
      %s261 = sadd.s32 %s20, 1
      %v262 = vstv %s261
      %vm263 = vcmp.eq.s32.totalorder %v253, %v262
      %vm264 = vcmp.eq.s32.totalorder %v254, %v262
      %vm265 = vcmp.eq.s32.totalorder %v255, %v262
      %vm266 = vcmp.eq.s32.totalorder %v256, %v262
      %vm267 = vcmp.eq.s32.totalorder %v257, %v262
      %vm268 = vcmp.eq.s32.totalorder %v258, %v262
      %vm269 = vcmp.eq.s32.totalorder %v259, %v262
      %vm270 = vcmp.eq.s32.totalorder %v260, %v262
      %v271 = vsel %vm263, 1, 0
      %v272 = vsel %vm264, 1, 0
      %v273 = vsel %vm265, 1, 0
      %v274 = vsel %vm266, 1, 0
      %v275 = vsel %vm267, 1, 0
      %v276 = vsel %vm268, 1, 0
      %v277 = vsel %vm269, 1, 0
      %v278 = vsel %vm270, 1, 0
      %v279 = vcvt.s32.f32 %v271
      %v280 = vcvt.s32.f32 %v272
      %v281 = vcvt.s32.f32 %v273
      %v282 = vcvt.s32.f32 %v274
      %v283 = vcvt.s32.f32 %v275
      %v284 = vcvt.s32.f32 %v276
      %v285 = vcvt.s32.f32 %v277
      %v286 = vcvt.s32.f32 %v278
      %v287 = vmul.f32 %v245, %v279
      %v288 = vmul.f32 %v246, %v280
      %v289 = vmul.f32 %v247, %v281
      %v290 = vmul.f32 %v248, %v282
      %v291 = vmul.f32 %v249, %v283
      %v292 = vmul.f32 %v250, %v284
      %v293 = vmul.f32 %v251, %v285
      %v294 = vmul.f32 %v252, %v286
      %v295 = vadd.f32 %v287, %v288
      %v296 = vadd.f32 %v295, %v289
      %v297 = vadd.f32 %v296, %v290
      %v298 = vadd.f32 %v297, %v291
      %v299 = vadd.f32 %v298, %v292
      %v300 = vadd.f32 %v299, %v293
      %vm301 = vcmask 1043456
      %v302 = vsel %vm301, %v294, 0.0
      %v303 = vadd.f32 %v300, %v302
      %v304 = vrot.slane %v303, 4
      %v305 = vadd.f32 %v303, %v304
      %v306 = vrot.slane %v305, 2
      %v307 = vadd.f32 %v305, %v306
      %v308 = vrot.slane %v307, 1
      %v309 = vadd.f32 %v307, %v308
      %v310 = vmul.f32 %v245, %v245
      %v311 = vmul.f32 %v246, %v246
      %v312 = vmul.f32 %v247, %v247
      %v313 = vmul.f32 %v248, %v248
      %v314 = vmul.f32 %v249, %v249
      %v315 = vmul.f32 %v250, %v250
      %v316 = vmul.f32 %v251, %v251
      %v317 = vmul.f32 %v252, %v252
      %v318 = vadd.f32 %v310, %v311
      %v319 = vadd.f32 %v318, %v312
      %v320 = vadd.f32 %v319, %v313
      %v321 = vadd.f32 %v320, %v314
      %v322 = vadd.f32 %v321, %v315
      %v323 = vadd.f32 %v322, %v316
      %v324 = vsel %vm301, %v317, 0.0
      %v325 = vadd.f32 %v323, %v324
      %v326 = vrot.slane %v325, 4
      %v327 = vadd.f32 %v325, %v326
      %v328 = vrot.slane %v327, 2
      %v329 = vadd.f32 %v327, %v328
      %v330 = vrot.slane %v329, 1
      %v331 = vadd.f32 %v329, %v330
      %v332 = vadd.f32 %v279, %v280
      %v333 = vadd.f32 %v332, %v281
      %v334 = vadd.f32 %v333, %v282
      %v335 = vadd.f32 %v334, %v283
      %v336 = vadd.f32 %v335, %v284
      %v337 = vadd.f32 %v336, %v285
      %v338 = vsel %vm301, %v286, 0.0
      %v339 = vadd.f32 %v337, %v338
      %v340 = vrot.slane %v339, 4
      %v341 = vadd.f32 %v339, %v340
      %v342 = vrot.slane %v341, 2
      %v343 = vadd.f32 %v341, %v342
      %v344 = vrot.slane %v343, 1
      %v345 = vadd.f32 %v343, %v344
      %vm346 = vcmask 1040384
      %v347 = vsel %vm346, %v309, %v331
      %vm348 = vcmask 1041408
      %v349 = vsel %vm348, %v347, %v345
      // Predicated region
      $region33: #{tpu_custom_call.1} parent=27 // pred_check
        %p350 = pneg %p237
      $region34: #{tpu_custom_call.1} parent=27 // pred_check_branch
        %352 = sbr.rel (%p350) target = $region36
      $region35: #{tpu_custom_call.1} parent=27 // pred_region
        %v353 = vld [vmem:[%s235] sm:$0x7]
        %v354 = vadd.f32 %v353, %v349
        %355 = vst [vmem:[%s235] sm:$0x7] %v354
      $region36: #{tpu_custom_call.1} parent=27 // pred_fallthru
        _
      %p356 = scmp.eq.s32.totalorder %s20, 1
      // Predicated region
      $region37: #{tpu_custom_call.1} parent=27 // pred_check
        %p357 = pneg %p356
      $region38: #{tpu_custom_call.1} parent=27 // pred_check_branch
        %359 = sbr.rel (%p357) target = $region40
      $region39: #{tpu_custom_call.1} parent=27 // pred_region
        %s360 = scalar_lea.vmem %s235, 4
        %v361 = vld [vmem:[%s360] sm:$0x7]
        %v362 = vadd.f32 %v361, %v349
        %363 = vst [vmem:[%s360] sm:$0x7] %v362
      $region40: #{tpu_custom_call.1} parent=27 // pred_fallthru
        _
      %p364 = scmp.eq.s32.totalorder %s20, 2
      // Predicated region
      $region41: #{tpu_custom_call.1} parent=27 // pred_check
        %p365 = pneg %p364
      $region42: #{tpu_custom_call.1} parent=27 // pred_check_branch
        %367 = sbr.rel (%p365) target = $region44
      $region43: #{tpu_custom_call.1} parent=27 // pred_region
        %s368 = scalar_lea.vmem %s235, 8
        %v369 = vld [vmem:[%s368] sm:$0x7]
        %v370 = vadd.f32 %v369, %v349
        %371 = vst [vmem:[%s368] sm:$0x7] %v370
      $region44: #{tpu_custom_call.1} parent=27 // pred_fallthru
        _
      %p372 = scmp.lt.s32.totalorder %s18, 1
      %s373 = scalar_select %p372, %s18, 1
      %s374 = smul.addr %s373, 3
      %s375 = smul.addr %s374, 4
      %s376 = scalar_lea.vmem %s2, %s375
      // Predicated region
      $region45: #{tpu_custom_call.1} parent=27 // pred_check
        %p377 = pneg %p110
      $region46: #{tpu_custom_call.1} parent=27 // pred_check_branch
        %379 = sbr.rel (%p377) target = $region48
      $region47: #{tpu_custom_call.1} parent=27 // pred_region
        _
      $region48: #{tpu_custom_call.1} parent=27 // pred_fallthru
        _
    $region28: #{tpu_custom_call.1} parent=5 // pred_fallthru
      _
    %p380 = scmp.le.s32.totalorder 2, %s8
    // Predicated region
    $region49: #{tpu_custom_call.1} parent=5 // pred_check
      %p381 = pneg %p380
    $region50: #{tpu_custom_call.1} parent=5 // pred_check_branch
      %383 = sbr.rel (%p381) target = $region52
    $region51: #{tpu_custom_call.1} parent=5 // pred_region
      %s384 = ssub.s32 %s8, 2
      // Predicated region
      $region53: #{tpu_custom_call.1} parent=51 // pred_check
        %p385 = pneg %p116
      $region54: #{tpu_custom_call.1} parent=51 // pred_check_branch
        %387 = sbr.rel (%p385) target = $region56
      $region55: #{tpu_custom_call.1} parent=51 // pred_region
        %p388 = scmp.lt.s32.totalorder %s21, 1
        %s389 = scalar_select %p388, %s21, 1
        %s390 = smul.addr %s389, 3
        %s391 = smul.addr %s390, 4
        %s392 = scalar_lea.vmem %s2, %s391
      $region56: #{tpu_custom_call.1} parent=51 // pred_fallthru
        _
    $region52: #{tpu_custom_call.1} parent=5 // pred_fallthru
      _
  $region6: #{tpu_custom_call.1} parent=0 // loop_footer
    %s12 = sadd.s32 1, %s8
  $region7: #{tpu_custom_call.1} parent=0 // loop_footer_branch
    %7 = sbr.rel target = $region3
  $region8: #{tpu_custom_call.1} parent=0 // loop_exit
    _

</llo_original>
